<compile_context>
chip_gen: v5e
topology: v5e:2x2
jax: 0.10.0
libtpu: 0.0.40
codegen_flags: <defaults>
</compile_context>

<pallas_src>
import functools

import jax
import jax.numpy as jnp
from jax.experimental import pallas as pl
from jax.experimental.pallas import tpu as pltpu


def _round_up(x, m):
    return ((x + m - 1) // m) * m


def _cdiv(a, b):
    return -(-a // b)


def _vmem_capacity_bytes():
    """Best-effort trace-time query of per-core VMEM; conservative fallback."""
    try:
        cap = int(pltpu.get_tpu_info().vmem_capacity_bytes)
        if cap > 0:
            return cap
    except Exception:
        pass
    return 64 * 1024 * 1024  # v7x per-TC VMEM — safe lower bound for v5e/v6e too


def _pick_tile(dim, cap, prefs=(256, 128)):
    """Largest tile <= cap dividing `dim`, preferring 256- then 128-alignment.
    Falls back to the full extent (always legal for BlockSpec)."""
    if dim <= cap:
        return dim
    for align in prefs:
        t = (cap // align) * align
        while t >= align:
            if dim % t == 0:
                return t
            t -= align
    return dim


# ----------------------------------------------------------------------------
# Kernels
# ----------------------------------------------------------------------------
def dense_small_kernel(x_ref, w_ref, b_ref, o_ref):
    """Whole weight resident in VMEM: one MXU call + f32 bias add + store."""
    acc = jnp.dot(x_ref[...], w_ref[...], preferred_element_type=jnp.float32)
    o_ref[...] = (acc + b_ref[...]).astype(o_ref.dtype)


def dense_tiled_kernel(x_ref, w_ref, b_ref, o_ref):
    """(M, N, K) grid, K last.  The f32 output block doubles as the
    accumulator (bias folded into the k==0 init): no scratch, no epilogue."""
    k = pl.program_id(2)

    @pl.when(k == 0)
    def _():
        o_ref[...] = jnp.broadcast_to(b_ref[...], o_ref.shape)

    o_ref[...] += jnp.dot(x_ref[...], w_ref[...], preferred_element_type=jnp.float32)


# ----------------------------------------------------------------------------
# Parameter prep (one-time) and forward wrapper
# ----------------------------------------------------------------------------
def prepare_params(weight, bias, compute_dtype=jnp.bfloat16):
    """One-time parameter prep (call at init, NOT per forward).

    weight: (D_out, D_in) in nn.Linear convention; bias: (D_out,).
    - transpose to (D_in, D_out),
    - pad D_out to a multiple of 128 (lane-dense unmasked stores),
    - cast the weight to the MXU-native compute dtype (bf16 by default),
    - keep the bias in f32 (added to the f32 accumulator).
    """
    d_out, d_in = weight.shape
    d_out_p = _round_up(d_out, 128)
    w_t = (
        jnp.zeros((d_in, d_out_p), compute_dtype)
        .at[:, :d_out]
        .set(weight.T.astype(compute_dtype))
    )
    b_p = jnp.zeros((1, d_out_p), jnp.float32).at[0, :d_out].set(
        bias.astype(jnp.float32)
    )
    return w_t, b_p, d_out


def dense_forward(x, w_t, b_p, d_out):
    """x: (B, D_in). Returns (B, d_out, 1), matching `self.dense(x)[..., None]`."""
    B, D_in = x.shape
    D_in_w, D_out_p = w_t.shape
    assert D_in == D_in_w, (D_in, D_in_w)

    compute_dtype = w_t.dtype
    esize = jnp.dtype(compute_dtype).itemsize
    out_dtype = jnp.float32  # torch params are f32; output/accumulator stays f32

    x_c = x.astype(compute_dtype)

    vmem_cap = _vmem_capacity_bytes()
    vmem_budget = int(vmem_cap * 0.8)            # Mosaic headroom (matters on v7x)
    big_vmem = vmem_cap > 96 * 1024 * 1024       # v5e / v6e (128 MiB) vs v7x (64 MiB)

    weight_bytes = D_in * D_out_p * esize + D_out_p * 4

    if weight_bytes <= min(8 * 1024 * 1024, vmem_budget // 8):
        # ---- fast path: whole weight resident, M-only grid -----------------
        tm_cap = 512 if big_vmem else 256
        per_row = 2 * (D_in * esize + D_out_p * 4)          # dbl-buffered x + out rows
        avail = max(vmem_budget - 2 * weight_bytes, per_row * 8)
        tm_cap = min(tm_cap, max(8, (avail // max(per_row, 1)) // 8 * 8))

        n_blocks = max(1, _cdiv(_round_up(B, 8), tm_cap))
        tm = _round_up(_cdiv(B, n_blocks), 8)
        B_pad = tm * n_blocks

        x_p = (
            x_c
            if B_pad == B
            else jnp.zeros((B_pad, D_in), compute_dtype).at[:B].set(x_c)
        )

        vmem_needed = (
            2 * tm * D_in * esize + 2 * weight_bytes + 2 * tm * D_out_p * 4
        )
        cost = pl.CostEstimate(
            flops=2 * B_pad * D_in * D_out_p,
            transcendentals=0,
            bytes_accessed=(
                B_pad * D_in * esize
                + D_in * D_out_p * esize
                + D_out_p * 4
                + B_pad * D_out_p * 4
            ),
        )

        out = pl.pallas_call(
            dense_small_kernel,
            out_shape=jax.ShapeDtypeStruct((B_pad, D_out_p), out_dtype),
            grid_spec=pltpu.PrefetchScalarGridSpec(
                num_scalar_prefetch=0,
                grid=(n_blocks,),
                in_specs=[
                    pl.BlockSpec((tm, D_in), lambda i: (i, 0)),
                    pl.BlockSpec((D_in, D_out_p), lambda i: (0, 0)),
                    pl.BlockSpec((1, D_out_p), lambda i: (0, 0)),
                ],
                out_specs=pl.BlockSpec((tm, D_out_p), lambda i: (i, 0)),
            ),
            compiler_params=pltpu.CompilerParams(
                dimension_semantics=("parallel",),
                vmem_limit_bytes=min(
                    vmem_budget, max(2 * vmem_needed, 16 * 1024 * 1024)
                ),
            ),
            cost_estimate=cost,
        )(x_p, w_t, b_p)

    else:
        # ---- big path: (M, N, K) grid, f32 output as accumulator -----------
        tm_cap = 512 if big_vmem else 256
        tn_cap = 1024 if big_vmem else 512
        tk_cap = 2048 if big_vmem else 1024

        tn = _pick_tile(D_out_p, tn_cap)     # D_out_p is a multiple of 128
        tk = _pick_tile(D_in, tk_cap)
        # TODO(synk): if D_in has no 128-aligned divisor, pad K in prepare_params
        # instead of falling back to the full extent here.

        n_blocks_m = max(1, _cdiv(_round_up(B, 8), tm_cap))
        tm = _round_up(_cdiv(B, n_blocks_m), 8)
        B_pad = tm * n_blocks_m

        x_p = (
            x_c
            if B_pad == B
            else jnp.zeros((B_pad, D_in), compute_dtype).at[:B].set(x_c)
        )

        grid = (n_blocks_m, D_out_p // tn, D_in // tk)
        grid_m, grid_n, _ = grid

        vmem_needed = (
            2 * tm * tk * esize       # x tiles (double-buffered)
            + 3 * tk * tn * esize     # weight tiles (Buffered(3))
            + 2 * tn * 4              # bias
            + 2 * tm * tn * 4         # output / accumulator
        )
        cost = pl.CostEstimate(
            flops=2 * B_pad * D_in * D_out_p,
            transcendentals=0,
            bytes_accessed=(
                grid_n * B_pad * D_in * esize        # x re-read once per N tile
                + grid_m * D_in * D_out_p * esize    # w re-read once per M tile
                + D_out_p * 4
                + B_pad * D_out_p * 4
            ),
        )

        out = pl.pallas_call(
            dense_tiled_kernel,
            out_shape=jax.ShapeDtypeStruct((B_pad, D_out_p), out_dtype),
            grid_spec=pltpu.PrefetchScalarGridSpec(
                num_scalar_prefetch=0,
                grid=grid,
                in_specs=[
                    pl.BlockSpec((tm, tk), lambda i, j, k: (i, k)),
                    pl.BlockSpec(
                        (tk, tn),
                        lambda i, j, k: (k, j),
                        pipeline_mode=pl.Buffered(3),
                    ),
                    pl.BlockSpec((1, tn), lambda i, j, k: (0, j)),
                ],
                out_specs=pl.BlockSpec((tm, tn), lambda i, j, k: (i, j)),
            ),
            compiler_params=pltpu.CompilerParams(
                dimension_semantics=("parallel", "parallel", "arbitrary"),
                vmem_limit_bytes=min(
                    vmem_budget, max(2 * vmem_needed, 16 * 1024 * 1024)
                ),
            ),
            cost_estimate=cost,
        )(x_p, w_t, b_p)

    # Glue: drop batch/lane padding only when it was added; [..., None] is free.
    if B_pad != B:
        out = out[:B]
    if D_out_p != d_out:
        out = out[:, :d_out]
    return out[..., None]


if __name__ == "__main__":
    # Small shapes consistent with the module: Dense(input_dim=32, output_dim=64)
    batch, input_dim, output_dim = 8, 32, 64

    key = jax.random.PRNGKey(0)
    kx, kw, kb = jax.random.split(key, 3)

    # Deterministic init mimicking nn.Linear default (uniform ±1/sqrt(fan_in)).
    bound = 1.0 / jnp.sqrt(jnp.float32(input_dim))
    weight = jax.random.uniform(kw, (output_dim, input_dim), jnp.float32, -bound, bound)
    bias = jax.random.uniform(kb, (output_dim,), jnp.float32, -bound, bound)

    x = jax.random.normal(kx, (batch, input_dim), jnp.float32)

    # One-time parameter prep (transpose / pad / bf16 cast hoisted out of forward).
    w_t, b_p, d_out = prepare_params(weight, bias)
    w_t, b_p = jax.block_until_ready((w_t, b_p))

    forward = jax.jit(functools.partial(dense_forward, d_out=d_out))
    y = forward(x, w_t, b_p)
    jax.block_until_ready(y)

    assert y.shape == (batch, output_dim, 1), y.shape

    # Tight check against a reference with the same bf16 operand rounding.
    x_bf = x.astype(jnp.bfloat16).astype(jnp.float32)
    w_bf = weight.astype(jnp.bfloat16).astype(jnp.float32)
    y_ref_bf = (x_bf @ w_bf.T + bias)[..., None]
    assert jnp.allclose(y, y_ref_bf, atol=1e-4, rtol=1e-4), float(
        jnp.max(jnp.abs(y - y_ref_bf))
    )

    # Loose check against the pure-f32 nn.Linear reference (bf16 operand error).
    y_ref = (x @ weight.T + bias)[..., None]
    assert jnp.allclose(y, y_ref, atol=3e-2, rtol=3e-2), float(
        jnp.max(jnp.abs(y - y_ref))
    )

    print("KERNEL_OK")
</pallas_src>

<mosaic_0001>
module attributes {stable_mosaic.version = 11 : i64} {
  func.func @dense_small_kernel(%arg0: i32, %arg1: memref<8x32xbf16, #tpu.memory_space<vmem>>, %arg2: memref<32x128xbf16, #tpu.memory_space<vmem>>, %arg3: memref<1x128xf32, #tpu.memory_space<vmem>>, %arg4: memref<8x128xf32, #tpu.memory_space<vmem>>) attributes {dimension_semantics = [#tpu.dimension_semantics<parallel>], iteration_bounds = array<i64: 1>, scalar_prefetch = 0 : i64, scratch_operands = 0 : i64, tpu.core_type = #tpu.core_type<tc>, window_params = [{transform_indices = @transform_0, window_bounds = array<i64: 8, 32>}, {pipeline_mode = #tpu.pipeline_mode<synchronous>, transform_indices = @transform_1, window_bounds = array<i64: 32, 128>}, {pipeline_mode = #tpu.pipeline_mode<synchronous>, transform_indices = @transform_2, window_bounds = array<i64: 1, 128>}, {transform_indices = @transform_3, window_bounds = array<i64: 8, 128>}]} {
    %c0 = arith.constant 0 : index
    %c0_0 = arith.constant 0 : index
    %0 = vector.load %arg1[%c0, %c0_0] : memref<8x32xbf16, #tpu.memory_space<vmem>>, vector<8x32xbf16>
    %c0_1 = arith.constant 0 : index
    %c0_2 = arith.constant 0 : index
    %1 = vector.load %arg2[%c0_1, %c0_2] : memref<32x128xbf16, #tpu.memory_space<vmem>>, vector<32x128xbf16>
    %cst = arith.constant dense<0.000000e+00> : vector<8x128xf32>
    %2 = tpu.matmul %0, %1, %cst {dimension_numbers = #tpu.dot_dimension_numbers<[1], [0], [0], [1], [0, 0, 1, 1], [], []>} : vector<8x32xbf16>, vector<32x128xbf16>, vector<8x128xf32> -> vector<8x128xf32>
    %c0_3 = arith.constant 0 : index
    %c0_4 = arith.constant 0 : index
    %3 = vector.load %arg3[%c0_3, %c0_4] : memref<1x128xf32, #tpu.memory_space<vmem>>, vector<1x128xf32>
    %4 = vector.broadcast %3 : vector<1x128xf32> to vector<8x128xf32>
    %5 = arith.addf %2, %4 : vector<8x128xf32>
    %c0_5 = arith.constant 0 : index
    %c0_6 = arith.constant 0 : index
    %6 = vector.load %arg4[%c0_5, %c0_6] : memref<8x128xf32, #tpu.memory_space<vmem>>, vector<8x128xf32>
    tpu.vector_store %arg4[%c0_5, %c0_6], %5 {strides = array<i32>} : memref<8x128xf32, #tpu.memory_space<vmem>>, vector<8x128xf32>,
    return
  }
  func.func @transform_0(%arg0: i32) -> (i32, i32) {
    %c0_i32 = arith.constant 0 : i32
    %c0_i32_0 = arith.constant 0 : i32
    return %arg0, %c0_i32 : i32, i32
  }
  func.func @transform_1(%arg0: i32) -> (i32, i32) {
    %c0_i32 = arith.constant 0 : i32
    %c0_i32_0 = arith.constant 0 : i32
    %c0_i32_1 = arith.constant 0 : i32
    return %c0_i32, %c0_i32_0 : i32, i32
  }
  func.func @transform_2(%arg0: i32) -> (i32, i32) {
    %c0_i32 = arith.constant 0 : i32
    %c0_i32_0 = arith.constant 0 : i32
    %c0_i32_1 = arith.constant 0 : i32
    return %c0_i32, %c0_i32_0 : i32, i32
  }
  func.func @transform_3(%arg0: i32) -> (i32, i32) {
    %c0_i32 = arith.constant 0 : i32
    %c0_i32_0 = arith.constant 0 : i32
    return %arg0, %c0_i32 : i32, i32
  }
}

</mosaic_0001>

<llo_original>
// kernel: dense_forward.1
$region0: #{dense_forward.1}
  #allocation0 [shape = 'u32[]', space=smem, size = 0x4, offset = 0x4, fixed_abs, tag = 'smem constant byte address 0x4 - core index']
  #allocation1 [shape = 'u32[72,128]{1,0:T(1,128)}', space=vmem, size = 0x9000, scoped, tag = 'internal scratch']
  %s0 = inlined_call_operand.vmem [shape: bf16[8,32], index: 0, kind: input, shape index: {}]
  %s1 = inlined_call_operand.hbm [shape: bf16[32,128], index: 1, kind: input, shape index: {}]
  %s2 = inlined_call_operand.vmem [shape: f32[1,128], index: 2, kind: input, shape index: {}]
  %s3 = inlined_call_operand.hbm [shape: f32[8,128], index: 3, kind: output, shape index: {}]
  %s4 = sld [smem:[#allocation0]]
  $region26: #{dense_forward.1} parent=0
    _
  %s6 = ssub.s32 1, %s4
  %s7 = scalar_select 0, %s6, %s4
  $region1: #{dense_forward.1} parent=0
    #allocation2 [shape = 'u8[8192]{0}', space=vmem, size = 0x2000, scoped, tag = 'input window, operand 1, single buffered']
    #allocation3 [shape = 's32[1]{0}', space=sflag, size = 0x4, scoped, tag = 'scoped memory for dense_forward.1']
    #allocation4 [shape = 's32[1]{0}', space=sflag, size = 0x4, scoped, tag = 'scoped memory for dense_forward.1']
    #allocation5 [shape = 'u8[4096]{0}', space=vmem, size = 0x1000, scoped, tag = 'output window, operand 0, single buffered']
    %8 = vsyncpa [#allocation3], 0
    %9 = vsyncpa [#allocation4], 0
    // Predicated region
    $region2: #{dense_forward.1} parent=1 // pred_check
      _
    $region3: #{dense_forward.1} parent=1 // pred_check_branch
      %11 = sbr.rel (0) target = $region5
    $region4: #{dense_forward.1} parent=1 // pred_region
      _
    $region5: #{dense_forward.1} parent=1 // pred_fallthru
      _
    // Predicated region
    $region6: #{dense_forward.1} parent=1 // pred_check
      _
    $region7: #{dense_forward.1} parent=1 // pred_check_branch
      %13 = sbr.rel (0) target = $region9
    $region8: #{dense_forward.1} parent=1 // pred_region
      %15 = vsyncadd [#allocation3], 0
      %s16 = sshll.u32 %s1, 4
      %s17 = int_to_ptr.hbm [resolvable:$true] %s16
      %s18 = sshll.u32 [#allocation2], 4
      %s19 = int_to_ptr.vmem [resolvable:$true] %s18
      %24 = dma.hbm_to_vmem [thread:$0]  %s17, 256, %s19, [#allocation3], 64, 64, 4
    $region9: #{dense_forward.1} parent=1 // pred_fallthru
      _
    // Predicated region
    $region10: #{dense_forward.1} parent=1 // pred_check
      _
    $region11: #{dense_forward.1} parent=1 // pred_check_branch
      %26 = sbr.rel (0) target = $region13
    $region12: #{dense_forward.1} parent=1 // pred_region
      _
    $region13: #{dense_forward.1} parent=1 // pred_fallthru
      _
    // Predicated region
    $region14: #{dense_forward.1} parent=1 // pred_check
      _
    $region15: #{dense_forward.1} parent=1 // pred_check_branch
      %28 = sbr.rel (0) target = $region17
    $region16: #{dense_forward.1} parent=1 // pred_region
      %30 = dma.done [#allocation3], 256
    $region17: #{dense_forward.1} parent=1 // pred_fallthru
      _
    %v32 = vld [vmem:[%s0] sm:$0xf]
    %v33 = vld [vmem:[#allocation2] sm:$0xf]
    %v34 = vld [vmem:[#allocation2 + $0x4] sm:$0xf]
    %v35 = vld [vmem:[#allocation2 + $0x8] sm:$0xf]
    %v36 = vld [vmem:[#allocation2 + $0xc] sm:$0xf]
    %v37 = vld [vmem:[%s2] sm:$0x1]
    %v39 = vperm.slane %v37, 0
    %v45 = vunpack.c.l.b16 %v33
    %v46 = vunpack.c.l.b16 %v34
    %v47 = vunpack.c.l.b16 %v35
    %v48 = vunpack.c.l.b16 %v36
    %v49 = vpack.c.b16 %v46, %v45
    %v50 = vpack.c.b16 %v48, %v47
    %vm53 = vcmask 261120
    %v55 = vsel %vm53, %v32, 0
    %57 = vmatpush.bf16.msra.mxu0 0
    %58 = vmatpush.bf16.msra.mxu0 0
    %59 = vmatpush.bf16.msra.mxu0 0
    %60 = vmatpush.bf16.msra.mxu0 0
    %61 = vmatpush.bf16.msra.mxu0 0
    %62 = vmatpush.bf16.msra.mxu0 0
    %63 = vmatpush.bf16.msra.mxu0 %v50
    %64 = vmatpush.bf16.msra.mxu0 %v49
    %65 = vmatmul.bf16.gmra.mxu0 %v55
    %v66 = vpop.f32.mrf.mxu0
    %v67 = vadd.f32 %v39, %v66
    %v68 = vpop.f32.mrf.mxu0
    %69 = vdwg.mxu0
    %70 = vst [vmem:[#allocation5] sm:$0xff] %v67
    // Predicated region
    $region18: #{dense_forward.1} parent=1 // pred_check
      _
    $region19: #{dense_forward.1} parent=1 // pred_check_branch
      %72 = sbr.rel (0) target = $region21
    $region20: #{dense_forward.1} parent=1 // pred_region
      %74 = vsyncadd [#allocation4], 0
      %s76 = sshll.u32 [#allocation5], 4
      %s77 = int_to_ptr.vmem [resolvable:$true] %s76
      %s78 = sshll.u32 %s3, 4
      %s79 = int_to_ptr.hbm [resolvable:$true] %s78
      %81 = dma.vmem_to_hbm [thread:$0]  %s77, 128, %s79, [#allocation4]
    $region21: #{dense_forward.1} parent=1 // pred_fallthru
      _
    // Predicated region
    $region22: #{dense_forward.1} parent=1 // pred_check
      _
    $region23: #{dense_forward.1} parent=1 // pred_check_branch
      %83 = sbr.rel (0) target = $region25
    $region24: #{dense_forward.1} parent=1 // pred_region
      %85 = dma.done [#allocation4], 128
    $region25: #{dense_forward.1} parent=1 // pred_fallthru
      _
    %86 = vsyncpa [#allocation3], 1
    %87 = vsyncpa [#allocation4], 1

</llo_original>
